<compile_context>
chip_gen: v7x
topology: tpu7x:2x2x1
jax: 0.10.0
libtpu: 0.0.40
codegen_flags: <defaults>
</compile_context>

<pallas_src>
import functools

import jax
import jax.numpy as jnp
from jax import lax
from jax.experimental import pallas as pl
from jax.experimental.pallas import tpu as pltpu

EPS = 1e-5


def _tln_kernel(x_ref, w_ref, b_ref, o_ref):
    # x_ref: (1, C, tS) tile -- channels on sublanes, T*H*W on lanes (dense).
    # w_ref / b_ref: (C, 1) affine params, broadcast along lanes.
    x = x_ref[...].astype(jnp.float32)
    inv_c = 1.0 / x.shape[1]

    # Single sweep over x: fused sum / sum-of-squares -> mean / biased variance.
    s1 = jnp.sum(x, axis=1, keepdims=True)           # (1, 1, tS)
    s2 = jnp.sum(x * x, axis=1, keepdims=True)       # (1, 1, tS)
    mean = s1 * inv_c
    var = s2 * inv_c - mean * mean                   # biased variance (PyTorch LN)
    inv = lax.rsqrt(var + EPS)                       # EUP rsqrt (separate slot)

    w = w_ref[...].astype(jnp.float32)               # (C, 1) -> broadcasts over lanes
    b = b_ref[...].astype(jnp.float32)
    o_ref[...] = ((x - mean) * inv * w + b).astype(o_ref.dtype)


def _pick_tile_s(S, C, itemsize, target_bytes=2 * 1024 * 1024):
    """Lane-axis tile: 128-aligned, ~target_bytes per (C, tS) block.

    Returns S itself when the whole axis fits (always layout-legal, even when
    S is not 128-aligned).  Otherwise prefers a large evenly-dividing
    128-multiple (no masked tail); falls back to the cap with a masked tail.
    """
    max_ts = max(128, (target_bytes // max(1, C * itemsize)) // 128 * 128)
    if S <= max_ts:
        return S
    # Prefer an evenly-dividing tile that is still reasonably large.
    for ts in range(max_ts, max(128, max_ts // 2) - 1, -128):
        if S % ts == 0:
            return ts
    # Large, awkwardly-sized S: big tiles + one masked tail block (cdiv grid).
    return max_ts


@functools.partial(jax.jit, static_argnames=("block_s",))
def temporal_layer_norm(x, weight, bias, *, block_s=None):
    """x: (B, C, T, H, W); weight/bias: (C,). Returns (B, C, T, H, W).

    `block_s` (static, optional) overrides the lane-axis tile; must be a
    multiple of 128 or equal to T*H*W.
    """
    B, C, T, H, W = x.shape
    S = T * H * W

    # Free reshape (contiguous trailing dims) -- no transpose, no extra HBM pass.
    x3 = x.reshape(B, C, S)
    tS = block_s if block_s is not None else _pick_tile_s(S, C, x.dtype.itemsize)
    grid = (B, pl.cdiv(S, tS))   # last block may be partial -> masked writeback

    w2 = weight.reshape(C, 1)
    b2 = bias.reshape(C, 1)

    out3 = pl.pallas_call(
        _tln_kernel,
        out_shape=jax.ShapeDtypeStruct((B, C, S), x.dtype),
        grid_spec=pltpu.PrefetchScalarGridSpec(
            num_scalar_prefetch=0,
            grid=grid,
            in_specs=[
                pl.BlockSpec((1, C, tS), lambda b, s: (b, 0, s)),
                pl.BlockSpec((C, 1), lambda b, s: (0, 0)),   # constant block: no re-DMA
                pl.BlockSpec((C, 1), lambda b, s: (0, 0)),
            ],
            out_specs=pl.BlockSpec((1, C, tS), lambda b, s: (b, 0, s)),
        ),
        compiler_params=pltpu.CompilerParams(
            dimension_semantics=("parallel", "parallel")),
    )(x3, w2, b2)

    return out3.reshape(B, C, T, H, W)


def _reference(x, weight, bias):
    # Pure-JAX reference of the PyTorch forward (normalize over C per position).
    xf = x.astype(jnp.float32)
    mean = jnp.mean(xf, axis=1, keepdims=True)
    var = jnp.mean((xf - mean) ** 2, axis=1, keepdims=True)
    y = (xf - mean) / jnp.sqrt(var + EPS)
    y = y * weight.reshape(1, -1, 1, 1, 1) + bias.reshape(1, -1, 1, 1, 1)
    return y.astype(x.dtype)


if __name__ == "__main__":
    key = jax.random.PRNGKey(0)
    k1, k2, k3 = jax.random.split(key, 3)

    # Main check: small shapes consistent with the module's forward.
    B, C, T, H, W = 2, 4, 8, 16, 16
    x = jax.random.normal(k1, (B, C, T, H, W), dtype=jnp.float32)
    weight = 1.0 + 0.1 * jnp.arange(C, dtype=jnp.float32)   # non-trivial affine
    bias = 0.01 * jnp.arange(C, dtype=jnp.float32)
    out = jax.block_until_ready(temporal_layer_norm(x, weight, bias))
    assert out.shape == (B, C, T, H, W)
    assert jnp.max(jnp.abs(out - _reference(x, weight, bias))) < 1e-4, "mismatch (main)"

    # Odd spatial extent (S = 3*5*7 = 105, not 128-aligned): full-axis block path.
    B2, C2, T2, H2, W2 = 1, 6, 3, 5, 7
    x2 = jax.random.normal(k2, (B2, C2, T2, H2, W2), dtype=jnp.float32)
    w_2 = 1.0 - 0.05 * jnp.arange(C2, dtype=jnp.float32)
    b_2 = 0.02 * jnp.arange(C2, dtype=jnp.float32)
    out2 = jax.block_until_ready(temporal_layer_norm(x2, w_2, b_2))
    assert jnp.max(jnp.abs(out2 - _reference(x2, w_2, b_2))) < 1e-4, "mismatch (odd S)"

    # Masked-tail path: force 128-lane tiles over S = 4*10*10 = 400 (cdiv grid,
    # partial last block) to exercise the ragged-tail handling.
    B3, C3, T3, H3, W3 = 2, 4, 4, 10, 10
    x3 = jax.random.normal(k3, (B3, C3, T3, H3, W3), dtype=jnp.float32)
    w_3 = 1.0 + 0.1 * jnp.arange(C3, dtype=jnp.float32)
    b_3 = 0.01 * jnp.arange(C3, dtype=jnp.float32)
    out3 = jax.block_until_ready(temporal_layer_norm(x3, w_3, b_3, block_s=128))
    assert jnp.max(jnp.abs(out3 - _reference(x3, w_3, b_3))) < 1e-4, "mismatch (tail)"

    print("KERNEL_OK")
</pallas_src>

<mosaic_0001>
module attributes {stable_mosaic.version = 11 : i64} {
  func.func @_tln_kernel(%arg0: i32, %arg1: i32, %arg2: memref<1x4x2048xf32, #tpu.memory_space<vmem>>, %arg3: memref<4x1xf32, #tpu.memory_space<vmem>>, %arg4: memref<4x1xf32, #tpu.memory_space<vmem>>, %arg5: memref<1x4x2048xf32, #tpu.memory_space<vmem>>) attributes {dimension_semantics = [#tpu.dimension_semantics<parallel>, #tpu.dimension_semantics<parallel>], iteration_bounds = array<i64: 2, 1>, scalar_prefetch = 0 : i64, scratch_operands = 0 : i64, tpu.core_type = #tpu.core_type<tc>, window_params = [{transform_indices = @transform_0, window_bounds = array<i64: 1, 4, 2048>}, {pipeline_mode = #tpu.pipeline_mode<synchronous>, transform_indices = @transform_1, window_bounds = array<i64: 4, 1>}, {pipeline_mode = #tpu.pipeline_mode<synchronous>, transform_indices = @transform_2, window_bounds = array<i64: 4, 1>}, {transform_indices = @transform_3, window_bounds = array<i64: 1, 4, 2048>}]} {
    %c0 = arith.constant 0 : index
    %c0_0 = arith.constant 0 : index
    %c0_1 = arith.constant 0 : index
    %0 = vector.load %arg2[%c0, %c0_0, %c0_1] : memref<1x4x2048xf32, #tpu.memory_space<vmem>>, vector<1x4x2048xf32>
    %cst = arith.constant dense<0.000000e+00> : vector<1x2048xf32>
    %1 = vector.multi_reduction <add>, %0, %cst [1] : vector<1x4x2048xf32> to vector<1x2048xf32>
    %2 = vector.shape_cast %1 : vector<1x2048xf32> to vector<1x1x2048xf32>
    %3 = arith.mulf %0, %0 : vector<1x4x2048xf32>
    %cst_2 = arith.constant dense<0.000000e+00> : vector<1x2048xf32>
    %4 = vector.multi_reduction <add>, %3, %cst_2 [1] : vector<1x4x2048xf32> to vector<1x2048xf32>
    %5 = vector.shape_cast %4 : vector<1x2048xf32> to vector<1x1x2048xf32>
    %cst_3 = arith.constant 2.500000e-01 : f32
    %6 = vector.broadcast %cst_3 : f32 to vector<1x1x2048xf32>
    %7 = arith.mulf %2, %6 : vector<1x1x2048xf32>
    %cst_4 = arith.constant 2.500000e-01 : f32
    %8 = vector.broadcast %cst_4 : f32 to vector<1x1x2048xf32>
    %9 = arith.mulf %5, %8 : vector<1x1x2048xf32>
    %10 = arith.mulf %7, %7 : vector<1x1x2048xf32>
    %11 = arith.subf %9, %10 : vector<1x1x2048xf32>
    %cst_5 = arith.constant 9.99999974E-6 : f32
    %12 = vector.broadcast %cst_5 : f32 to vector<1x1x2048xf32>
    %13 = arith.addf %11, %12 : vector<1x1x2048xf32>
    %14 = math.rsqrt %13 : vector<1x1x2048xf32>
    %c0_6 = arith.constant 0 : index
    %c0_7 = arith.constant 0 : index
    %15 = vector.load %arg3[%c0_6, %c0_7] : memref<4x1xf32, #tpu.memory_space<vmem>>, vector<4x1xf32>
    %c0_8 = arith.constant 0 : index
    %c0_9 = arith.constant 0 : index
    %16 = vector.load %arg4[%c0_8, %c0_9] : memref<4x1xf32, #tpu.memory_space<vmem>>, vector<4x1xf32>
    %17 = vector.broadcast %7 : vector<1x1x2048xf32> to vector<1x4x2048xf32>
    %18 = arith.subf %0, %17 : vector<1x4x2048xf32>
    %19 = vector.broadcast %14 : vector<1x1x2048xf32> to vector<1x4x2048xf32>
    %20 = arith.mulf %18, %19 : vector<1x4x2048xf32>
    %21 = vector.shape_cast %15 : vector<4x1xf32> to vector<1x4x1xf32>
    %22 = vector.broadcast %21 : vector<1x4x1xf32> to vector<1x4x2048xf32>
    %23 = arith.mulf %20, %22 : vector<1x4x2048xf32>
    %24 = vector.shape_cast %16 : vector<4x1xf32> to vector<1x4x1xf32>
    %25 = vector.broadcast %24 : vector<1x4x1xf32> to vector<1x4x2048xf32>
    %26 = arith.addf %23, %25 : vector<1x4x2048xf32>
    %c0_10 = arith.constant 0 : index
    %c0_11 = arith.constant 0 : index
    %c0_12 = arith.constant 0 : index
    %27 = vector.load %arg5[%c0_10, %c0_11, %c0_12] : memref<1x4x2048xf32, #tpu.memory_space<vmem>>, vector<1x4x2048xf32>
    tpu.vector_store %arg5[%c0_10, %c0_11, %c0_12], %26 {strides = array<i32>} : memref<1x4x2048xf32, #tpu.memory_space<vmem>>, vector<1x4x2048xf32>,
    return
  }
  func.func @transform_0(%arg0: i32, %arg1: i32) -> (i32, i32, i32) {
    %c0_i32 = arith.constant 0 : i32
    %c0_i32_0 = arith.constant 0 : i32
    return %arg0, %c0_i32, %arg1 : i32, i32, i32
  }
  func.func @transform_1(%arg0: i32, %arg1: i32) -> (i32, i32) {
    %c0_i32 = arith.constant 0 : i32
    %c0_i32_0 = arith.constant 0 : i32
    %c0_i32_1 = arith.constant 0 : i32
    return %c0_i32, %c0_i32_0 : i32, i32
  }
  func.func @transform_2(%arg0: i32, %arg1: i32) -> (i32, i32) {
    %c0_i32 = arith.constant 0 : i32
    %c0_i32_0 = arith.constant 0 : i32
    %c0_i32_1 = arith.constant 0 : i32
    return %c0_i32, %c0_i32_0 : i32, i32
  }
  func.func @transform_3(%arg0: i32, %arg1: i32) -> (i32, i32, i32) {
    %c0_i32 = arith.constant 0 : i32
    %c0_i32_0 = arith.constant 0 : i32
    return %arg0, %c0_i32, %arg1 : i32, i32, i32
  }
}

</mosaic_0001>

<llo_original>
// kernel: temporal_layer_norm.1
$region0: #{temporal_layer_norm.1}
  #allocation0 [shape = 'u32[]', space=smem, size = 0x4, offset = 0x4, fixed_abs, tag = 'smem constant byte address 0x4 - core index']
  #allocation1 [shape = 'u32[144,128]{1,0:T(1,128)}', space=vmem, size = 0x12000, scoped, tag = 'internal scratch']
  %s0 = inlined_call_operand.vmem [shape: f32[2,4,2048], index: 0, kind: input, shape index: {}]
  %s1 = inlined_call_operand.vmem [shape: f32[4,1], index: 1, kind: input, shape index: {}]
  %s2 = inlined_call_operand.vmem [shape: f32[4,1], index: 2, kind: input, shape index: {}]
  %s3 = inlined_call_operand.vmem [shape: f32[2,4,2048], index: 3, kind: output, shape index: {}]
  %s4 = sld [smem:[#allocation0]]
  $region45: #{temporal_layer_norm.1} parent=0
    _
  %s6 = ssub.s32 1, %s4
  %s7 = scalar_select 0, %s6, %s4
  loop: start=0, step=1, limit=4
  $region2: #{temporal_layer_norm.1} parent=0 // loop_pre_header
    _
  $region3: #{temporal_layer_norm.1} parent=0 // loop_header
    %s9 = sphi 0, %s13
    %p10 = scmp.ge.s32.totalorder %s9, 4
    %s16 = sphi 0, %s28
    %s17 = sphi 0, %s24
    %s18 = sphi 0, %s16
    %s19 = sphi 0, %s17
    %s20 = sphi 0, %s18
    %s21 = sphi 0, %s19
    %s33 = sphi 0, %s35
    %s36 = sphi 0, %s33
    %s37 = sphi 0, %s36
    %s53 = sphi 0, %s37
    %s57 = sphi 0, %s57
    %s59 = sphi 0, %s57
    %s60 = sphi 0, %s59
    %s74 = sphi 0, %s60
    %s78 = sphi 0, %s78
    %s80 = sphi 0, %s78
    %s81 = sphi 0, %s80
    %s95 = sphi 0, %s81
    %s103 = sphi 0, %s105
    %s106 = sphi 0, %s103
    %s107 = sphi 0, %s106
    %s123 = sphi 0, %s107
  $region4: #{temporal_layer_norm.1} parent=0 // loop_header_branch
    %12 = sbr.rel (%p10) target = $region8
  $region5: #{temporal_layer_norm.1} parent=0 // loop_body
    %s14 = ssub.s32 %s9, 1
    %s15 = ssub.s32 %s9, 2
    %s22 = sadd.s32 1, %s17
    %p23 = scmp.ge.s32.totalorder %s22, 1
    %s24 = scalar_select %p23, 0, %s22
    %s25 = sadd.s32 1, %s16
    %s26 = scalar_select %p23, %s25, %s16
    %p27 = scmp.ge.s32.totalorder %s26, 2
    %s28 = scalar_select %p27, 0, %s26
    %s29 = ssub.s32 %s16, %s28
    %s30 = ssub.s32 %s17, %s24
    %s31 = sor.u32 %s29, %s30
    %p32 = scmp.eq.s32.totalorder %s31, 0
    %s34 = sadd.s32 %s33, 1
    %s35 = scalar_select %p32, %s33, %s34
    %p38 = pneg %p32
    %p39 = scmp.eq.s32.totalorder %s9, 1
    %p40 = por %p38, %p39
    %p41 = scmp.ne.s32.totalorder %s33, %s36
    %p42 = scmp.eq.s32.totalorder %s9, 0
    %p43 = por %p41, %p42
    %p44 = scmp.ne.s32.totalorder %s33, %s36
    %p45 = scmp.eq.s32.totalorder %s14, 1
    %p46 = por %p44, %p45
    %p47 = scmp.ne.s32.totalorder %s36, %s37
    %p48 = scmp.eq.s32.totalorder %s14, 0
    %p49 = por %p47, %p48
    %p50 = scmp.ne.s32.totalorder %s36, %s37
    %p51 = scmp.eq.s32.totalorder %s15, 1
    %p52 = por %p50, %p51
    %p54 = scmp.ne.s32.totalorder %s37, %s53
    %p55 = scmp.eq.s32.totalorder %s15, 0
    %p56 = por %p54, %p55
    %s58 = sadd.s32 %s57, 1
    %p61 = scmp.eq.s32.totalorder %s9, 1
    %p62 = scmp.ne.s32.totalorder %s57, %s59
    %p63 = scmp.eq.s32.totalorder %s9, 0
    %p64 = por %p62, %p63
    %p65 = scmp.ne.s32.totalorder %s57, %s59
    %p66 = scmp.eq.s32.totalorder %s14, 1
    %p67 = por %p65, %p66
    %p68 = scmp.ne.s32.totalorder %s59, %s60
    %p69 = scmp.eq.s32.totalorder %s14, 0
    %p70 = por %p68, %p69
    %p71 = scmp.ne.s32.totalorder %s59, %s60
    %p72 = scmp.eq.s32.totalorder %s15, 1
    %p73 = por %p71, %p72
    %p75 = scmp.ne.s32.totalorder %s60, %s74
    %p76 = scmp.eq.s32.totalorder %s15, 0
    %p77 = por %p75, %p76
    %s79 = sadd.s32 %s78, 1
    %p82 = scmp.eq.s32.totalorder %s9, 1
    %p83 = scmp.ne.s32.totalorder %s78, %s80
    %p84 = scmp.eq.s32.totalorder %s9, 0
    %p85 = por %p83, %p84
    %p86 = scmp.ne.s32.totalorder %s78, %s80
    %p87 = scmp.eq.s32.totalorder %s14, 1
    %p88 = por %p86, %p87
    %p89 = scmp.ne.s32.totalorder %s80, %s81
    %p90 = scmp.eq.s32.totalorder %s14, 0
    %p91 = por %p89, %p90
    %p92 = scmp.ne.s32.totalorder %s80, %s81
    %p93 = scmp.eq.s32.totalorder %s15, 1
    %p94 = por %p92, %p93
    %p96 = scmp.ne.s32.totalorder %s81, %s95
    %p97 = scmp.eq.s32.totalorder %s15, 0
    %p98 = por %p96, %p97
    %s99 = ssub.s32 %s16, %s28
    %s100 = ssub.s32 %s17, %s24
    %s101 = sor.u32 %s99, %s100
    %p102 = scmp.eq.s32.totalorder %s101, 0
    %s104 = sadd.s32 %s103, 1
    %s105 = scalar_select %p102, %s103, %s104
    %p108 = pneg %p102
    %p109 = scmp.eq.s32.totalorder %s9, 1
    %p110 = por %p108, %p109
    %p111 = scmp.ne.s32.totalorder %s103, %s106
    %p112 = scmp.eq.s32.totalorder %s9, 0
    %p113 = por %p111, %p112
    %p114 = scmp.ne.s32.totalorder %s103, %s106
    %p115 = scmp.eq.s32.totalorder %s14, 1
    %p116 = por %p114, %p115
    %p117 = scmp.ne.s32.totalorder %s106, %s107
    %p118 = scmp.eq.s32.totalorder %s14, 0
    %p119 = por %p117, %p118
    %p120 = scmp.ne.s32.totalorder %s106, %s107
    %p121 = scmp.eq.s32.totalorder %s15, 1
    %p122 = por %p120, %p121
    %p124 = scmp.ne.s32.totalorder %s107, %s123
    %p125 = scmp.eq.s32.totalorder %s15, 0
    %p126 = por %p124, %p125
    %p127 = scmp.le.s32.totalorder 1, %s9
    %p128 = scmp.lt.s32.totalorder %s9, 3
    %p129 = pnand %p127, %p128
    %p130 = pneg %p129
    // Predicated region
    $region9: #{temporal_layer_norm.1} parent=5 // pred_check
      _
    $region10: #{temporal_layer_norm.1} parent=5 // pred_check_branch
      %132 = sbr.rel (%p129) target = $region12
    $region11: #{temporal_layer_norm.1} parent=5 // pred_region
      %s133 = ssub.s32 %s9, 1
      // Predicated region
      $region13: #{temporal_layer_norm.1} parent=11 // pred_check
        %p134 = pneg %p70
      $region14: #{temporal_layer_norm.1} parent=11 // pred_check_branch
        %136 = sbr.rel (%p134) target = $region16
      $region15: #{temporal_layer_norm.1} parent=11 // pred_region
        _
      $region16: #{temporal_layer_norm.1} parent=11 // pred_fallthru
        _
      // Predicated region
      $region17: #{temporal_layer_norm.1} parent=11 // pred_check
        %p137 = pneg %p91
      $region18: #{temporal_layer_norm.1} parent=11 // pred_check_branch
        %139 = sbr.rel (%p137) target = $region20
      $region19: #{temporal_layer_norm.1} parent=11 // pred_region
        _
      $region20: #{temporal_layer_norm.1} parent=11 // pred_fallthru
        _
    $region12: #{temporal_layer_norm.1} parent=5 // pred_fallthru
      _
    %p140 = scmp.lt.s32.totalorder %s9, 2
    // Predicated region
    $region21: #{temporal_layer_norm.1} parent=5 // pred_check
      %p141 = pneg %p140
    $region22: #{temporal_layer_norm.1} parent=5 // pred_check_branch
      %143 = sbr.rel (%p141) target = $region24
    $region23: #{temporal_layer_norm.1} parent=5 // pred_region
      // Predicated region
      $region25: #{temporal_layer_norm.1} parent=23 // pred_check
        %p144 = pneg %p43
      $region26: #{temporal_layer_norm.1} parent=23 // pred_check_branch
        %146 = sbr.rel (%p144) target = $region28
      $region27: #{temporal_layer_norm.1} parent=23 // pred_region
        %s147 = smul.u32 16, %s17
        %p148 = scmp.lt.s32.totalorder %s16, 1
        %s149 = scalar_select %p148, %s16, 1
        %p150 = scmp.lt.s32.totalorder %s147, 15
        %s151 = scalar_select %p150, %s147, 15
        %s152 = smul.addr %s149, 16
        %s153 = sadd.s32 %s151, %s152
        %s154 = smul.addr %s153, 4
        %s155 = scalar_lea.vmem %s0, %s154
        %s156 = smul.u32 16, %s17
      $region28: #{temporal_layer_norm.1} parent=23 // pred_fallthru
        _
    $region24: #{temporal_layer_norm.1} parent=5 // pred_fallthru
      _
    %p157 = scmp.le.s32.totalorder 1, %s9
    %p158 = scmp.lt.s32.totalorder %s9, 3
    %p159 = pnand %p157, %p158
    %p160 = pneg %p159
    // Predicated region
    $region29: #{temporal_layer_norm.1} parent=5 // pred_check
      _
    $region30: #{temporal_layer_norm.1} parent=5 // pred_check_branch
      %162 = sbr.rel (%p159) target = $region32
    $region31: #{temporal_layer_norm.1} parent=5 // pred_region
      %s163 = ssub.s32 %s9, 1
      %s164 = smul.u32 16, %s19
      %p165 = scmp.lt.s32.totalorder %s18, 1
      %s166 = scalar_select %p165, %s18, 1
      %p167 = scmp.lt.s32.totalorder %s164, 15
      %s168 = scalar_select %p167, %s164, 15
      %s169 = smul.addr %s166, 16
      %s170 = sadd.s32 %s168, %s169
      %s171 = smul.addr %s170, 4
      %s172 = scalar_lea.vmem %s0, %s171
      %p173 = pneg %p49
      %p174 = pneg %p46
      %p175 = pneg %p70
      %p176 = pneg %p67
      %p177 = pneg %p91
      %p178 = pneg %p88
      %p179 = pneg %p119
      %p180 = pneg %p116
      %s181 = smul.u32 16, %s19
      %p182 = scmp.lt.s32.totalorder %s18, 1
      %s183 = scalar_select %p182, %s18, 1
      %p184 = scmp.lt.s32.totalorder %s181, 15
      %s185 = scalar_select %p184, %s181, 15
      %s186 = smul.addr %s183, 16
      %s187 = sadd.s32 %s185, %s186
      %s188 = smul.addr %s187, 4
      %s189 = scalar_lea.vmem %s3, %s188
      %s190 = smul.u32 16, %s19
      %p191 = scmp.lt.s32.totalorder %s18, 1
      %s192 = scalar_select %p191, %s18, 1
      %p193 = scmp.lt.s32.totalorder %s190, 15
      %s194 = scalar_select %p193, %s190, 15
      %s195 = smul.addr %s192, 16
      %s196 = sadd.s32 %s194, %s195
      %s197 = smul.addr %s196, 4
      %s198 = scalar_lea.vmem %s0, %s197
      %s199 = smul.u32 16, %s19
      %s200 = smul.u32 16, %s19
      %p201 = scmp.lt.s32.totalorder %s18, 1
      %s202 = scalar_select %p201, %s18, 1
      %p203 = scmp.lt.s32.totalorder %s200, 15
      %s204 = scalar_select %p203, %s200, 15
      %s205 = smul.addr %s202, 16
      %s206 = sadd.s32 %s204, %s205
      %s207 = smul.addr %s206, 4
      %s208 = scalar_lea.vmem %s3, %s207
      %s209 = smul.u32 16, %s19
      %v210 = vld [vmem:[%s198] sm:$0xff]
      %v211 = vld [vmem:[%s198 + $0x8] sm:$0xff]
      %v212 = vld [vmem:[%s198 + $0x10] sm:$0xff]
      %v213 = vld [vmem:[%s198 + $0x18] sm:$0xff]
      %v214 = vld [vmem:[%s198 + $0x20] sm:$0xff]
      %v215 = vld [vmem:[%s198 + $0x28] sm:$0xff]
      %v216 = vld [vmem:[%s198 + $0x30] sm:$0xff]
      %v217 = vld [vmem:[%s198 + $0x38] sm:$0xff]
      %v226 = vcombine.high %v210, %v210
      %v227 = vcombine.high %v211, %v211
      %v228 = vcombine.high %v212, %v212
      %v229 = vcombine.high %v213, %v213
      %v230 = vcombine.high %v214, %v214
      %v231 = vcombine.high %v215, %v215
      %v232 = vcombine.high %v216, %v216
      %v233 = vcombine.high %v217, %v217
      %vm242 = vcmask 1043456
      %v243 = vsel %vm242, %v210, 0.0
      %v244 = vrot.slane %v243, 4
      %v245 = vadd.f32 %v243, %v244
      %v246 = vrot.slane %v245, 2
      %v247 = vadd.f32 %v245, %v246
      %v248 = vrot.slane %v247, 1
      %v249 = vadd.f32 %v247, %v248
      %v250 = vsel %vm242, %v226, 0.0
      %v251 = vrot.slane %v250, 4
      %v252 = vadd.f32 %v250, %v251
      %v253 = vrot.slane %v252, 2
      %v254 = vadd.f32 %v252, %v253
      %v255 = vrot.slane %v254, 1
      %v256 = vadd.f32 %v254, %v255
      %v257 = vsel %vm242, %v211, 0.0
      %v258 = vrot.slane %v257, 4
      %v259 = vadd.f32 %v257, %v258
      %v260 = vrot.slane %v259, 2
      %v261 = vadd.f32 %v259, %v260
      %v262 = vrot.slane %v261, 1
      %v263 = vadd.f32 %v261, %v262
      %v264 = vsel %vm242, %v227, 0.0
      %v265 = vrot.slane %v264, 4
      %v266 = vadd.f32 %v264, %v265
      %v267 = vrot.slane %v266, 2
      %v268 = vadd.f32 %v266, %v267
      %v269 = vrot.slane %v268, 1
      %v270 = vadd.f32 %v268, %v269
      %v271 = vsel %vm242, %v212, 0.0
      %v272 = vrot.slane %v271, 4
      %v273 = vadd.f32 %v271, %v272
      %v274 = vrot.slane %v273, 2
      %v275 = vadd.f32 %v273, %v274
      %v276 = vrot.slane %v275, 1
      %v277 = vadd.f32 %v275, %v276
      %v278 = vsel %vm242, %v228, 0.0
      %v279 = vrot.slane %v278, 4
      %v280 = vadd.f32 %v278, %v279
      %v281 = vrot.slane %v280, 2
      %v282 = vadd.f32 %v280, %v281
      %v283 = vrot.slane %v282, 1
      %v284 = vadd.f32 %v282, %v283
      %v285 = vsel %vm242, %v213, 0.0
      %v286 = vrot.slane %v285, 4
      %v287 = vadd.f32 %v285, %v286
      %v288 = vrot.slane %v287, 2
      %v289 = vadd.f32 %v287, %v288
      %v290 = vrot.slane %v289, 1
      %v291 = vadd.f32 %v289, %v290
      %v292 = vsel %vm242, %v229, 0.0
      %v293 = vrot.slane %v292, 4
      %v294 = vadd.f32 %v292, %v293
      %v295 = vrot.slane %v294, 2
      %v296 = vadd.f32 %v294, %v295
      %v297 = vrot.slane %v296, 1
      %v298 = vadd.f32 %v296, %v297
      %v299 = vsel %vm242, %v214, 0.0
      %v300 = vrot.slane %v299, 4
      %v301 = vadd.f32 %v299, %v300
      %v302 = vrot.slane %v301, 2
      %v303 = vadd.f32 %v301, %v302
      %v304 = vrot.slane %v303, 1
      %v305 = vadd.f32 %v303, %v304
      %v306 = vsel %vm242, %v230, 0.0
      %v307 = vrot.slane %v306, 4
      %v308 = vadd.f32 %v306, %v307
      %v309 = vrot.slane %v308, 2
      %v310 = vadd.f32 %v308, %v309
      %v311 = vrot.slane %v310, 1
      %v312 = vadd.f32 %v310, %v311
      %v313 = vsel %vm242, %v215, 0.0
      %v314 = vrot.slane %v313, 4
      %v315 = vadd.f32 %v313, %v314
      %v316 = vrot.slane %v315, 2
      %v317 = vadd.f32 %v315, %v316
      %v318 = vrot.slane %v317, 1
      %v319 = vadd.f32 %v317, %v318
      %v320 = vsel %vm242, %v231, 0.0
      %v321 = vrot.slane %v320, 4
      %v322 = vadd.f32 %v320, %v321
      %v323 = vrot.slane %v322, 2
      %v324 = vadd.f32 %v322, %v323
      %v325 = vrot.slane %v324, 1
      %v326 = vadd.f32 %v324, %v325
      %v327 = vsel %vm242, %v216, 0.0
      %v328 = vrot.slane %v327, 4
      %v329 = vadd.f32 %v327, %v328
      %v330 = vrot.slane %v329, 2
      %v331 = vadd.f32 %v329, %v330
      %v332 = vrot.slane %v331, 1
      %v333 = vadd.f32 %v331, %v332
      %v334 = vsel %vm242, %v232, 0.0
      %v335 = vrot.slane %v334, 4
      %v336 = vadd.f32 %v334, %v335
      %v337 = vrot.slane %v336, 2
      %v338 = vadd.f32 %v336, %v337
      %v339 = vrot.slane %v338, 1
      %v340 = vadd.f32 %v338, %v339
      %v341 = vsel %vm242, %v217, 0.0
      %v342 = vrot.slane %v341, 4
      %v343 = vadd.f32 %v341, %v342
      %v344 = vrot.slane %v343, 2
      %v345 = vadd.f32 %v343, %v344
      %v346 = vrot.slane %v345, 1
      %v347 = vadd.f32 %v345, %v346
      %v348 = vsel %vm242, %v233, 0.0
      %v349 = vrot.slane %v348, 4
      %v350 = vadd.f32 %v348, %v349
      %v351 = vrot.slane %v350, 2
      %v352 = vadd.f32 %v350, %v351
      %v353 = vrot.slane %v352, 1
      %v354 = vadd.f32 %v352, %v353
      %v355 = vmul.f32 %v210, %v210
      %v356 = vmul.f32 %v211, %v211
      %v357 = vmul.f32 %v212, %v212
      %v358 = vmul.f32 %v213, %v213
      %v359 = vmul.f32 %v214, %v214
      %v360 = vmul.f32 %v215, %v215
      %v361 = vmul.f32 %v216, %v216
      %v362 = vmul.f32 %v217, %v217
      %v371 = vcombine.high %v355, %v355
      %v372 = vcombine.high %v356, %v356
      %v373 = vcombine.high %v357, %v357
      %v374 = vcombine.high %v358, %v358
      %v375 = vcombine.high %v359, %v359
      %v376 = vcombine.high %v360, %v360
      %v377 = vcombine.high %v361, %v361
      %v378 = vcombine.high %v362, %v362
      %v387 = vsel %vm242, %v355, 0.0
      %v388 = vrot.slane %v387, 4
      %v389 = vadd.f32 %v387, %v388
      %v390 = vrot.slane %v389, 2
      %v391 = vadd.f32 %v389, %v390
      %v392 = vrot.slane %v391, 1
      %v393 = vadd.f32 %v391, %v392
      %v394 = vsel %vm242, %v371, 0.0
      %v395 = vrot.slane %v394, 4
      %v396 = vadd.f32 %v394, %v395
      %v397 = vrot.slane %v396, 2
      %v398 = vadd.f32 %v396, %v397
      %v399 = vrot.slane %v398, 1
      %v400 = vadd.f32 %v398, %v399
      %v401 = vsel %vm242, %v356, 0.0
      %v402 = vrot.slane %v401, 4
      %v403 = vadd.f32 %v401, %v402
      %v404 = vrot.slane %v403, 2
      %v405 = vadd.f32 %v403, %v404
      %v406 = vrot.slane %v405, 1
      %v407 = vadd.f32 %v405, %v406
      %v408 = vsel %vm242, %v372, 0.0
      %v409 = vrot.slane %v408, 4
      %v410 = vadd.f32 %v408, %v409
      %v411 = vrot.slane %v410, 2
      %v412 = vadd.f32 %v410, %v411
      %v413 = vrot.slane %v412, 1
      %v414 = vadd.f32 %v412, %v413
      %v415 = vsel %vm242, %v357, 0.0
      %v416 = vrot.slane %v415, 4
      %v417 = vadd.f32 %v415, %v416
      %v418 = vrot.slane %v417, 2
      %v419 = vadd.f32 %v417, %v418
      %v420 = vrot.slane %v419, 1
      %v421 = vadd.f32 %v419, %v420
      %v422 = vsel %vm242, %v373, 0.0
      %v423 = vrot.slane %v422, 4
      %v424 = vadd.f32 %v422, %v423
      %v425 = vrot.slane %v424, 2
      %v426 = vadd.f32 %v424, %v425
      %v427 = vrot.slane %v426, 1
      %v428 = vadd.f32 %v426, %v427
      %v429 = vsel %vm242, %v358, 0.0
      %v430 = vrot.slane %v429, 4
      %v431 = vadd.f32 %v429, %v430
      %v432 = vrot.slane %v431, 2
      %v433 = vadd.f32 %v431, %v432
      %v434 = vrot.slane %v433, 1
      %v435 = vadd.f32 %v433, %v434
      %v436 = vsel %vm242, %v374, 0.0
      %v437 = vrot.slane %v436, 4
      %v438 = vadd.f32 %v436, %v437
      %v439 = vrot.slane %v438, 2
      %v440 = vadd.f32 %v438, %v439
      %v441 = vrot.slane %v440, 1
      %v442 = vadd.f32 %v440, %v441
      %v443 = vsel %vm242, %v359, 0.0
      %v444 = vrot.slane %v443, 4
      %v445 = vadd.f32 %v443, %v444
      %v446 = vrot.slane %v445, 2
      %v447 = vadd.f32 %v445, %v446
      %v448 = vrot.slane %v447, 1
      %v449 = vadd.f32 %v447, %v448
      %v450 = vsel %vm242, %v375, 0.0
      %v451 = vrot.slane %v450, 4
      %v452 = vadd.f32 %v450, %v451
      %v453 = vrot.slane %v452, 2
      %v454 = vadd.f32 %v452, %v453
      %v455 = vrot.slane %v454, 1
      %v456 = vadd.f32 %v454, %v455
      %v457 = vsel %vm242, %v360, 0.0
      %v458 = vrot.slane %v457, 4
      %v459 = vadd.f32 %v457, %v458
      %v460 = vrot.slane %v459, 2
      %v461 = vadd.f32 %v459, %v460
      %v462 = vrot.slane %v461, 1
      %v463 = vadd.f32 %v461, %v462
      %v464 = vsel %vm242, %v376, 0.0
      %v465 = vrot.slane %v464, 4
      %v466 = vadd.f32 %v464, %v465
      %v467 = vrot.slane %v466, 2
      %v468 = vadd.f32 %v466, %v467
      %v469 = vrot.slane %v468, 1
      %v470 = vadd.f32 %v468, %v469
      %v471 = vsel %vm242, %v361, 0.0
      %v472 = vrot.slane %v471, 4
      %v473 = vadd.f32 %v471, %v472
      %v474 = vrot.slane %v473, 2
      %v475 = vadd.f32 %v473, %v474
      %v476 = vrot.slane %v475, 1
      %v477 = vadd.f32 %v475, %v476
      %v478 = vsel %vm242, %v377, 0.0
      %v479 = vrot.slane %v478, 4
      %v480 = vadd.f32 %v478, %v479
      %v481 = vrot.slane %v480, 2
      %v482 = vadd.f32 %v480, %v481
      %v483 = vrot.slane %v482, 1
      %v484 = vadd.f32 %v482, %v483
      %v485 = vsel %vm242, %v362, 0.0
      %v486 = vrot.slane %v485, 4
      %v487 = vadd.f32 %v485, %v486
      %v488 = vrot.slane %v487, 2
      %v489 = vadd.f32 %v487, %v488
      %v490 = vrot.slane %v489, 1
      %v491 = vadd.f32 %v489, %v490
      %v492 = vsel %vm242, %v378, 0.0
      %v493 = vrot.slane %v492, 4
      %v494 = vadd.f32 %v492, %v493
      %v495 = vrot.slane %v494, 2
      %v496 = vadd.f32 %v494, %v495
      %v497 = vrot.slane %v496, 1
      %v498 = vadd.f32 %v496, %v497
      %v499 = vmul.f32 %v249, 0.25
      %v500 = vmul.f32 %v256, 0.25
      %v501 = vmul.f32 %v263, 0.25
      %v502 = vmul.f32 %v270, 0.25
      %v503 = vmul.f32 %v277, 0.25
      %v504 = vmul.f32 %v284, 0.25
      %v505 = vmul.f32 %v291, 0.25
      %v506 = vmul.f32 %v298, 0.25
      %v507 = vmul.f32 %v305, 0.25
      %v508 = vmul.f32 %v312, 0.25
      %v509 = vmul.f32 %v319, 0.25
      %v510 = vmul.f32 %v326, 0.25
      %v511 = vmul.f32 %v333, 0.25
      %v512 = vmul.f32 %v340, 0.25
      %v513 = vmul.f32 %v347, 0.25
      %v514 = vmul.f32 %v354, 0.25
      %v515 = vmul.f32 %v393, 0.25
      %v516 = vmul.f32 %v400, 0.25
      %v517 = vmul.f32 %v407, 0.25
      %v518 = vmul.f32 %v414, 0.25
      %v519 = vmul.f32 %v421, 0.25
      %v520 = vmul.f32 %v428, 0.25
      %v521 = vmul.f32 %v435, 0.25
      %v522 = vmul.f32 %v442, 0.25
      %v523 = vmul.f32 %v449, 0.25
      %v524 = vmul.f32 %v456, 0.25
      %v525 = vmul.f32 %v463, 0.25
      %v526 = vmul.f32 %v470, 0.25
      %v527 = vmul.f32 %v477, 0.25
      %v528 = vmul.f32 %v484, 0.25
      %v529 = vmul.f32 %v491, 0.25
      %v530 = vmul.f32 %v498, 0.25
      %v531 = vmul.f32 %v499, %v499
      %v532 = vmul.f32 %v500, %v500
      %v533 = vmul.f32 %v501, %v501
      %v534 = vmul.f32 %v502, %v502
      %v535 = vmul.f32 %v503, %v503
      %v536 = vmul.f32 %v504, %v504
      %v537 = vmul.f32 %v505, %v505
      %v538 = vmul.f32 %v506, %v506
      %v539 = vmul.f32 %v507, %v507
      %v540 = vmul.f32 %v508, %v508
      %v541 = vmul.f32 %v509, %v509
      %v542 = vmul.f32 %v510, %v510
      %v543 = vmul.f32 %v511, %v511
      %v544 = vmul.f32 %v512, %v512
      %v545 = vmul.f32 %v513, %v513
      %v546 = vmul.f32 %v514, %v514
      %v547 = vsub.f32 %v515, %v531
      %v548 = vsub.f32 %v516, %v532
      %v549 = vsub.f32 %v517, %v533
      %v550 = vsub.f32 %v518, %v534
      %v551 = vsub.f32 %v519, %v535
      %v552 = vsub.f32 %v520, %v536
      %v553 = vsub.f32 %v521, %v537
      %v554 = vsub.f32 %v522, %v538
      %v555 = vsub.f32 %v523, %v539
      %v556 = vsub.f32 %v524, %v540
      %v557 = vsub.f32 %v525, %v541
      %v558 = vsub.f32 %v526, %v542
      %v559 = vsub.f32 %v527, %v543
      %v560 = vsub.f32 %v528, %v544
      %v561 = vsub.f32 %v529, %v545
      %v562 = vsub.f32 %v530, %v546
      %v563 = vadd.f32 %v547, 1e-05
      %v564 = vadd.f32 %v548, 1e-05
      %v565 = vadd.f32 %v549, 1e-05
      %v566 = vadd.f32 %v550, 1e-05
      %v567 = vadd.f32 %v551, 1e-05
      %v568 = vadd.f32 %v552, 1e-05
      %v569 = vadd.f32 %v553, 1e-05
      %v570 = vadd.f32 %v554, 1e-05
      %v571 = vadd.f32 %v555, 1e-05
      %v572 = vadd.f32 %v556, 1e-05
      %v573 = vadd.f32 %v557, 1e-05
      %v574 = vadd.f32 %v558, 1e-05
      %v575 = vadd.f32 %v559, 1e-05
      %v576 = vadd.f32 %v560, 1e-05
      %v577 = vadd.f32 %v561, 1e-05
      %v578 = vadd.f32 %v562, 1e-05
      %v579 = vrsqrt.pop %v563
      %v580 = vrsqrt.pop %v564
      %v581 = vrsqrt.pop %v565
      %v582 = vrsqrt.pop %v566
      %v583 = vrsqrt.pop %v567
      %v584 = vrsqrt.pop %v568
      %v585 = vrsqrt.pop %v569
      %v586 = vrsqrt.pop %v570
      %v587 = vrsqrt.pop %v571
      %v588 = vrsqrt.pop %v572
      %v589 = vrsqrt.pop %v573
      %v590 = vrsqrt.pop %v574
      %v591 = vrsqrt.pop %v575
      %v592 = vrsqrt.pop %v576
      %v593 = vrsqrt.pop %v577
      %v594 = vrsqrt.pop %v578
      %v595 = vld [vmem:[%s1] sm:$0xf]
      %v596 = vld [vmem:[%s2] sm:$0xf]
      %v613 = vcombine.low %v499, %v500
      %v614 = vcombine.low %v501, %v502
      %v615 = vcombine.low %v503, %v504
      %v616 = vcombine.low %v505, %v506
      %v617 = vcombine.low %v507, %v508
      %v618 = vcombine.low %v509, %v510
      %v619 = vcombine.low %v511, %v512
      %v620 = vcombine.low %v513, %v514
      %v629 = vsub.f32 %v210, %v613
      %v630 = vsub.f32 %v211, %v614
      %v631 = vsub.f32 %v212, %v615
      %v632 = vsub.f32 %v213, %v616
      %v633 = vsub.f32 %v214, %v617
      %v634 = vsub.f32 %v215, %v618
      %v635 = vsub.f32 %v216, %v619
      %v636 = vsub.f32 %v217, %v620
      %v653 = vcombine.low %v579, %v580
      %v654 = vcombine.low %v581, %v582
      %v655 = vcombine.low %v583, %v584
      %v656 = vcombine.low %v585, %v586
      %v657 = vcombine.low %v587, %v588
      %v658 = vcombine.low %v589, %v590
      %v659 = vcombine.low %v591, %v592
      %v660 = vcombine.low %v593, %v594
      %v669 = vmul.f32 %v629, %v653
      %v670 = vmul.f32 %v630, %v654
      %v671 = vmul.f32 %v631, %v655
      %v672 = vmul.f32 %v632, %v656
      %v673 = vmul.f32 %v633, %v657
      %v674 = vmul.f32 %v634, %v658
      %v675 = vmul.f32 %v635, %v659
      %v676 = vmul.f32 %v636, %v660
      %678 = vset.pattern.permute.xlu0 0
      %679 = vperm.xlu0 %678, %v595
      %v680 = vpop.permute.xlu0 %679
      %v682 = vunpack.c.l.s4 839922192
      %v683 = vunpack.c.0.s8 %v682
      %v684 = vlaneseq
      %v685 = vshrl.u32 %v684, 7
      %v686 = vsub.s32 %v683, %v685
      %v687 = vrot.slane %v680, %v686
      %v689 = vmul.f32 %v669, %v687
      %v690 = vmul.f32 %v670, %v687
      %v691 = vmul.f32 %v671, %v687
      %v692 = vmul.f32 %v672, %v687
      %v693 = vmul.f32 %v673, %v687
      %v694 = vmul.f32 %v674, %v687
      %v695 = vmul.f32 %v675, %v687
      %v696 = vmul.f32 %v676, %v687
      %698 = vset.pattern.permute.xlu0 0
      %699 = vperm.xlu0 %698, %v596
      %v700 = vpop.permute.xlu0 %699
      %v702 = vunpack.c.l.s4 839922192
      %v703 = vunpack.c.0.s8 %v702
      %v704 = vlaneseq
      %v705 = vshrl.u32 %v704, 7
      %v706 = vsub.s32 %v703, %v705
      %v707 = vrot.slane %v700, %v706
      %v709 = vadd.f32 %v689, %v707
      %v710 = vadd.f32 %v690, %v707
      %v711 = vadd.f32 %v691, %v707
      %v712 = vadd.f32 %v692, %v707
      %v713 = vadd.f32 %v693, %v707
      %v714 = vadd.f32 %v694, %v707
      %v715 = vadd.f32 %v695, %v707
      %v716 = vadd.f32 %v696, %v707
      %717 = vst [vmem:[%s208] sm:$0xff] %v709
      %718 = vst [vmem:[%s208 + $0x8] sm:$0xff] %v710
      %719 = vst [vmem:[%s208 + $0x10] sm:$0xff] %v711
      %720 = vst [vmem:[%s208 + $0x18] sm:$0xff] %v712
      %721 = vst [vmem:[%s208 + $0x20] sm:$0xff] %v713
      %722 = vst [vmem:[%s208 + $0x28] sm:$0xff] %v714
      %723 = vst [vmem:[%s208 + $0x30] sm:$0xff] %v715
      %724 = vst [vmem:[%s208 + $0x38] sm:$0xff] %v716
      %s725 = smul.u32 16, %s19
      %p726 = scmp.lt.s32.totalorder %s18, 1
      %s727 = scalar_select %p726, %s18, 1
      %p728 = scmp.lt.s32.totalorder %s725, 15
      %s729 = scalar_select %p728, %s725, 15
      %s730 = smul.addr %s727, 16
      %s731 = sadd.s32 %s729, %s730
      %s732 = smul.addr %s731, 4
      %s733 = scalar_lea.vmem %s3, %s732
      // Predicated region
      $region33: #{temporal_layer_norm.1} parent=31 // pred_check
        %p734 = pneg %p116
      $region34: #{temporal_layer_norm.1} parent=31 // pred_check_branch
        %736 = sbr.rel (%p734) target = $region36
      $region35: #{temporal_layer_norm.1} parent=31 // pred_region
        %s737 = smul.u32 16, %s19
      $region36: #{temporal_layer_norm.1} parent=31 // pred_fallthru
        _
    $region32: #{temporal_layer_norm.1} parent=5 // pred_fallthru
      _
    %p738 = scmp.le.s32.totalorder 2, %s9
    // Predicated region
    $region37: #{temporal_layer_norm.1} parent=5 // pred_check
      %p739 = pneg %p738
    $region38: #{temporal_layer_norm.1} parent=5 // pred_check_branch
      %741 = sbr.rel (%p739) target = $region40
    $region39: #{temporal_layer_norm.1} parent=5 // pred_region
      %s742 = ssub.s32 %s9, 2
      // Predicated region
      $region41: #{temporal_layer_norm.1} parent=39 // pred_check
        %p743 = pneg %p122
      $region42: #{temporal_layer_norm.1} parent=39 // pred_check_branch
        %745 = sbr.rel (%p743) target = $region44
      $region43: #{temporal_layer_norm.1} parent=39 // pred_region
        %s746 = smul.u32 16, %s21
        %p747 = scmp.lt.s32.totalorder %s20, 1
        %s748 = scalar_select %p747, %s20, 1
        %p749 = scmp.lt.s32.totalorder %s746, 15
        %s750 = scalar_select %p749, %s746, 15
        %s751 = smul.addr %s748, 16
        %s752 = sadd.s32 %s750, %s751
        %s753 = smul.addr %s752, 4
        %s754 = scalar_lea.vmem %s3, %s753
      $region44: #{temporal_layer_norm.1} parent=39 // pred_fallthru
        _
    $region40: #{temporal_layer_norm.1} parent=5 // pred_fallthru
      _
  $region6: #{temporal_layer_norm.1} parent=0 // loop_footer
    %s13 = sadd.s32 1, %s9
  $region7: #{temporal_layer_norm.1} parent=0 // loop_footer_branch
    %8 = sbr.rel target = $region3
  $region8: #{temporal_layer_norm.1} parent=0 // loop_exit
    _

</llo_original>
